<compile_context>
chip_gen: v7x
topology: tpu7x:2x2x1
jax: 0.10.0
libtpu: 0.0.40
codegen_flags: <defaults>
</compile_context>

<pallas_src>
import functools

import jax
import jax.numpy as jnp
from jax.experimental import pallas as pl
from jax.experimental.pallas import tpu as pltpu


def _vmem_capacity_bytes():
    """Physical VMEM per core; conservative (v7x-sized) fallback."""
    try:
        info = pltpu.get_tpu_info()
        cap = getattr(info, "vmem_capacity_bytes", None)
        if cap:
            return int(cap)
    except Exception:
        pass
    return 64 << 20


def _pick_tile_h(H, C, W, itemsize, vmem_phys):
    """Largest multiple-of-8 row tile dividing H that fits the VMEM budget."""
    # ~1/4 of physical VMEM: ~32 MiB on v5e/v6e (128 MiB), ~16 MiB on v7x (64 MiB).
    budget = min(vmem_phys // 4, 32 << 20)
    # per-row working set: ~6 full-size f32 temporaries inside the kernel
    # (pred_f32, E, scaled, probs, onehot, logp) + double-buffered native-dtype
    # input block + double-buffered int32 label block.
    row_bytes = C * W * (6 * 4 + 2 * itemsize) + W * 2 * 4
    best = None
    th = 8
    while th <= H:
        if H % th == 0 and th * row_bytes <= budget:
            best = th
        th += 8
    if best is None:
        # either even th=8 overflows the budget (take it anyway, best effort)
        # or H has no multiple-of-8 divisor (whole-extent tile is then the only
        # shape the (8,128) BlockSpec rule allows).
        best = 8 if H % 8 == 0 else H
    return best


def _class_sums(x):
    """[C, TH, W] -> [C, 1] per-class sums.

    Folds the sublane (TH) axis with VPU major-axis adds first so the
    cross-lane (XLU) reduction only sees an 8-row slab per class.
    """
    C, TH, W = x.shape
    if TH % 8 == 0 and TH > 8:
        x = jnp.sum(x.reshape(C, TH // 8, 8, W), axis=1)      # [C, 8, W] (VPU)
    x = jnp.sum(x, axis=-1)                                   # lane reduce (XLU)
    return jnp.sum(x, axis=-1, keepdims=True)                 # [C, 1]


def _combine_stats_kernel(pred_ref, label_ref, stats_ref, *, approx_reciprocal):
    pred = pred_ref[...].astype(jnp.float32)        # [C, TH, W] per-tile upcast
    label = label_ref[...]                          # [TH, W] int32
    C, TH, W = pred.shape

    # ---- log-softmax statistics over W (PyTorch dim=-1) --------------------
    m_w = jnp.max(pred, axis=-1, keepdims=True)     # [C, TH, 1]
    e = jnp.exp(pred - m_w)                         # the ONLY full-size exp pass
    lse = jnp.log(jnp.sum(e, axis=-1, keepdims=True))
    shift_w = m_w + lse                             # log_softmax = pred - shift_w

    # ---- channel softmax (PyTorch dim=1) from the SAME exp pass ------------
    # exp(pred - M) = E * exp(m_w - M) with M = max over classes of m_w, so
    # only a [C, TH, 1] exp is needed instead of a second [C, TH, W] one.
    m_all = jnp.max(m_w, axis=0, keepdims=True)     # [1, TH, 1]
    scaled = e * jnp.exp(m_w - m_all)               # [C, TH, W] = exp(pred - M)
    denom = jnp.sum(scaled, axis=0, keepdims=True)  # [1, TH, W] major-axis adds
    # floor guards the pathological all-channels-underflow lane; approx=True
    # would route the divide to the EUP vrcp slot if the VALU ever binds.
    inv_denom = pl.reciprocal(jnp.maximum(denom, 1e-30), approx=approx_reciprocal)
    probs = scaled * inv_denom                      # softmax over channels

    # ---- one-hot targets via class-axis iota (no per-class Python loop) ----
    cls_ids = jax.lax.broadcasted_iota(jnp.int32, (C, TH), 0)[:, :, None]
    onehot = (label[None, :, :] == cls_ids).astype(jnp.float32)   # [C, TH, W]

    # ---- per-class partial sums for this tile -------------------------------
    inter = _class_sums(probs * onehot)             # [C, 1]
    psum = _class_sums(probs)                       # [C, 1]
    tsum = _class_sums(onehot)                      # [C, 1]
    ce = _class_sums(onehot * (pred - shift_w))     # [C, 1] CE numerator

    stats_ref[...] = jnp.concatenate([inter, psum, tsum, ce], axis=-1)  # [C, 4]


def combine_loss_pallas(cls_score, label, loss_weight=(1.0, 0.5), tile_h=None,
                        approx_reciprocal=False, smooth=1.0):
    """cls_score: [B, C, H, W] float (f32/bf16); label: [B, H, W] integer ids."""
    B, C, H, W = cls_score.shape
    assert label.shape == (B, H, W)
    assert len(loss_weight) == 2
    alpha, beta = float(loss_weight[0]), float(loss_weight[1])

    itemsize = jnp.dtype(cls_score.dtype).itemsize
    vmem_phys = _vmem_capacity_bytes()
    if tile_h is None:
        tile_h = _pick_tile_h(H, C, W, itemsize, vmem_phys)
    assert H % tile_h == 0, (H, tile_h)
    assert tile_h == H or tile_h % 8 == 0, tile_h
    num_h_tiles = H // tile_h

    # ~3/4 of physical VMEM: ~96 MiB on v5e/v6e, ~48 MiB on v7x.
    vmem_limit = max(32 << 20, min(int(vmem_phys * 3 // 4), 100 << 20))

    kernel = functools.partial(_combine_stats_kernel,
                               approx_reciprocal=approx_reciprocal)

    # Per-tile partial sums; every grid step writes its own [C, 4] block, so
    # both grid axes are pure maps ("parallel") and no cross-step VMEM state
    # is needed (dual-TC friendly on v7x).
    stats = pl.pallas_call(
        kernel,
        out_shape=jax.ShapeDtypeStruct((B, num_h_tiles, C, 4), jnp.float32),
        grid=(B, num_h_tiles),
        in_specs=[
            # native-dtype blocks (bf16 input halves HBM traffic); upcast in-kernel
            pl.BlockSpec((None, C, tile_h, W), lambda b, t: (b, 0, t, 0)),
            pl.BlockSpec((None, tile_h, W), lambda b, t: (b, t, 0)),
        ],
        out_specs=pl.BlockSpec((None, None, C, 4), lambda b, t: (b, t, 0, 0)),
        compiler_params=pltpu.CompilerParams(
            dimension_semantics=("parallel", "parallel"),
            vmem_limit_bytes=vmem_limit,
        ),
    )(cls_score, label.astype(jnp.int32))

    # ---- tiny finalize in plain JAX (global sums over all tiles) -----------
    sums = jnp.sum(stats, axis=(0, 1))                       # [C, 4]
    inter, psum, tsum = sums[:, 0], sums[:, 1], sums[:, 2]
    ce = -jnp.sum(sums[:, 3]) / jnp.float32(B * C * H * W)   # .mean() over B*C*H*W
    dice_per_class = 1.0 - (2.0 * inter + smooth) / (psum + tsum + smooth)
    dice = jnp.sum(jnp.where(tsum > 0.0, dice_per_class, 0.0)) / jnp.float32(C)
    return jnp.float32(alpha) * ce + jnp.float32(beta) * dice


def combine_loss_reference(cls_score, label, loss_weight=(1.0, 0.5)):
    """Pure-JAX reference mirroring the PyTorch code (for validation only)."""
    alpha, beta = loss_weight
    B, C, H, W = cls_score.shape
    pred = cls_score.astype(jnp.float32)
    targets = jax.nn.one_hot(label, C, axis=1, dtype=jnp.float32)  # [B, C, H, W]
    # soft cross entropy (log_softmax over dim=-1)
    log_pred = jax.nn.log_softmax(pred, axis=-1)
    ce = -jnp.mean(log_pred * targets)
    # soft dice (softmax over dim=1)
    probs = jax.nn.softmax(pred, axis=1)
    smooth = 1.0
    dice = 0.0
    for c in range(C):
        p_c, t_c = probs[:, c], targets[:, c]
        tsum = jnp.sum(t_c)
        d = 1.0 - (2.0 * jnp.sum(p_c * t_c) + smooth) / (jnp.sum(p_c) + tsum + smooth)
        dice = dice + jnp.where(tsum > 0, d, 0.0)
    dice = dice / C
    return alpha * ce + beta * dice


if __name__ == "__main__":
    B, C, H, W = 2, 4, 32, 16
    key = jax.random.PRNGKey(0)
    k1, k2 = jax.random.split(key)
    # bf16 logits: the kernel accepts them directly and upcasts per tile.
    cls_score = jax.random.normal(k1, (B, C, H, W), dtype=jnp.float32).astype(jnp.bfloat16)
    label = jax.random.randint(k2, (B, H, W), 0, C, dtype=jnp.int32)
    # PyTorch infers n_classes = max(label)+1; for its shapes to be valid the
    # max class must be present, so force it (static C is then equivalent).
    label = label.at[0, 0, 0].set(C - 1)

    ref = combine_loss_reference(cls_score, label, loss_weight=(1.0, 0.5))

    # tile_h=16 -> grid (B=2, H/tile_h=2): exercises the multi-tile
    # partial-sum path plus the plain-JAX finalize.
    loss = combine_loss_pallas(cls_score, label, loss_weight=(1.0, 0.5), tile_h=16)
    loss = jax.block_until_ready(loss)
    assert jnp.allclose(loss, ref, rtol=1e-4, atol=1e-5), (loss, ref)

    # auto tile_h: exercises the generation-aware _pick_tile_h path.
    loss2 = jax.block_until_ready(
        combine_loss_pallas(cls_score, label, loss_weight=(1.0, 0.5)))
    assert jnp.allclose(loss2, ref, rtol=1e-4, atol=1e-5), (loss2, ref)

    print("KERNEL_OK")
</pallas_src>

<mosaic_0001>
module attributes {stable_mosaic.version = 11 : i64} {
  func.func @_combine_stats_kernel(%arg0: i32, %arg1: i32, %arg2: memref<1x4x16x16xbf16, #tpu.memory_space<vmem>>, %arg3: memref<1x16x16xi32, #tpu.memory_space<vmem>>, %arg4: memref<1x1x4x4xf32, #tpu.memory_space<vmem>>) attributes {dimension_semantics = [#tpu.dimension_semantics<parallel>, #tpu.dimension_semantics<parallel>], iteration_bounds = array<i64: 2, 2>, scalar_prefetch = 0 : i64, scratch_operands = 0 : i64, tpu.core_type = #tpu.core_type<tc>, window_params = [{transform_indices = @transform_0, window_bounds = array<i64: 1, 4, 16, 16>}, {transform_indices = @transform_1, window_bounds = array<i64: 1, 16, 16>}, {transform_indices = @transform_2, window_bounds = array<i64: 1, 1, 4, 4>}]} {
    %c0 = arith.constant 0 : index
    %c0_0 = arith.constant 0 : index
    %c0_1 = arith.constant 0 : index
    %c0_2 = arith.constant 0 : index
    %0 = vector.load %arg2[%c0, %c0_0, %c0_1, %c0_2] : memref<1x4x16x16xbf16, #tpu.memory_space<vmem>>, vector<1x4x16x16xbf16>
    %1 = vector.shape_cast %0 : vector<1x4x16x16xbf16> to vector<4x16x16xbf16>
    %2 = arith.extf %1 : vector<4x16x16xbf16> to vector<4x16x16xf32>
    %c0_3 = arith.constant 0 : index
    %c0_4 = arith.constant 0 : index
    %c0_5 = arith.constant 0 : index
    %3 = vector.load %arg3[%c0_3, %c0_4, %c0_5] : memref<1x16x16xi32, #tpu.memory_space<vmem>>, vector<1x16x16xi32>
    %4 = vector.shape_cast %3 : vector<1x16x16xi32> to vector<16x16xi32>
    %cst = arith.constant dense<0xFF800000> : vector<4x16xf32>
    %5 = vector.multi_reduction <maximumf>, %2, %cst [2] : vector<4x16x16xf32> to vector<4x16xf32>
    %6 = vector.shape_cast %5 : vector<4x16xf32> to vector<4x16x1xf32>
    %7 = vector.broadcast %6 : vector<4x16x1xf32> to vector<4x16x16xf32>
    %8 = arith.subf %2, %7 : vector<4x16x16xf32>
    %9 = math.exp %8 : vector<4x16x16xf32>
    %cst_6 = arith.constant dense<0.000000e+00> : vector<4x16xf32>
    %10 = vector.multi_reduction <add>, %9, %cst_6 [2] : vector<4x16x16xf32> to vector<4x16xf32>
    %11 = vector.shape_cast %10 : vector<4x16xf32> to vector<4x16x1xf32>
    %12 = math.log %11 : vector<4x16x1xf32>
    %13 = arith.addf %6, %12 : vector<4x16x1xf32>
    %cst_7 = arith.constant dense<0xFF800000> : vector<16x1xf32>
    %14 = vector.multi_reduction <maximumf>, %6, %cst_7 [0] : vector<4x16x1xf32> to vector<16x1xf32>
    %15 = vector.shape_cast %14 : vector<16x1xf32> to vector<1x16x1xf32>
    %16 = vector.broadcast %15 : vector<1x16x1xf32> to vector<4x16x1xf32>
    %17 = arith.subf %6, %16 : vector<4x16x1xf32>
    %18 = math.exp %17 : vector<4x16x1xf32>
    %19 = vector.broadcast %18 : vector<4x16x1xf32> to vector<4x16x16xf32>
    %20 = arith.mulf %9, %19 : vector<4x16x16xf32>
    %cst_8 = arith.constant dense<0.000000e+00> : vector<16x16xf32>
    %21 = vector.multi_reduction <add>, %20, %cst_8 [0] : vector<4x16x16xf32> to vector<16x16xf32>
    %22 = vector.shape_cast %21 : vector<16x16xf32> to vector<1x16x16xf32>
    %cst_9 = arith.constant 1.000000e-30 : f32
    %23 = vector.broadcast %cst_9 : f32 to vector<1x16x16xf32>
    %24 = arith.maximumf %22, %23 : vector<1x16x16xf32>
    %25 = tpu.reciprocal %24 : vector<1x16x16xf32> -> vector<1x16x16xf32>
    %26 = vector.broadcast %25 : vector<1x16x16xf32> to vector<4x16x16xf32>
    %27 = arith.mulf %20, %26 : vector<4x16x16xf32>
    %28 = tpu.iota {dimensions = array<i32: 0>} : vector<4x16xi32>
    %29 = vector.shape_cast %28 : vector<4x16xi32> to vector<4x16x1xi32>
    %30 = vector.shape_cast %4 : vector<16x16xi32> to vector<1x16x16xi32>
    %31 = vector.broadcast %30 : vector<1x16x16xi32> to vector<4x16x16xi32>
    %32 = vector.broadcast %29 : vector<4x16x1xi32> to vector<4x16x16xi32>
    %33 = arith.cmpi eq, %31, %32 : vector<4x16x16xi32>
    %34 = arith.extui %33 : vector<4x16x16xi1> to vector<4x16x16xi32>
    %35 = arith.sitofp %34 : vector<4x16x16xi32> to vector<4x16x16xf32>
    %36 = arith.mulf %27, %35 : vector<4x16x16xf32>
    %37 = vector.shape_cast %36 : vector<4x16x16xf32> to vector<4x2x8x16xf32>
    %cst_10 = arith.constant dense<0.000000e+00> : vector<4x8x16xf32>
    %38 = vector.multi_reduction <add>, %37, %cst_10 [1] : vector<4x2x8x16xf32> to vector<4x8x16xf32>
    %cst_11 = arith.constant dense<0.000000e+00> : vector<4x8xf32>
    %39 = vector.multi_reduction <add>, %38, %cst_11 [2] : vector<4x8x16xf32> to vector<4x8xf32>
    %cst_12 = arith.constant dense<0.000000e+00> : vector<4xf32>
    %40 = vector.multi_reduction <add>, %39, %cst_12 [1] : vector<4x8xf32> to vector<4xf32>
    %41 = vector.shape_cast %40 : vector<4xf32> to vector<4x1xf32>
    %42 = vector.shape_cast %27 : vector<4x16x16xf32> to vector<4x2x8x16xf32>
    %cst_13 = arith.constant dense<0.000000e+00> : vector<4x8x16xf32>
    %43 = vector.multi_reduction <add>, %42, %cst_13 [1] : vector<4x2x8x16xf32> to vector<4x8x16xf32>
    %cst_14 = arith.constant dense<0.000000e+00> : vector<4x8xf32>
    %44 = vector.multi_reduction <add>, %43, %cst_14 [2] : vector<4x8x16xf32> to vector<4x8xf32>
    %cst_15 = arith.constant dense<0.000000e+00> : vector<4xf32>
    %45 = vector.multi_reduction <add>, %44, %cst_15 [1] : vector<4x8xf32> to vector<4xf32>
    %46 = vector.shape_cast %45 : vector<4xf32> to vector<4x1xf32>
    %47 = vector.shape_cast %35 : vector<4x16x16xf32> to vector<4x2x8x16xf32>
    %cst_16 = arith.constant dense<0.000000e+00> : vector<4x8x16xf32>
    %48 = vector.multi_reduction <add>, %47, %cst_16 [1] : vector<4x2x8x16xf32> to vector<4x8x16xf32>
    %cst_17 = arith.constant dense<0.000000e+00> : vector<4x8xf32>
    %49 = vector.multi_reduction <add>, %48, %cst_17 [2] : vector<4x8x16xf32> to vector<4x8xf32>
    %cst_18 = arith.constant dense<0.000000e+00> : vector<4xf32>
    %50 = vector.multi_reduction <add>, %49, %cst_18 [1] : vector<4x8xf32> to vector<4xf32>
    %51 = vector.shape_cast %50 : vector<4xf32> to vector<4x1xf32>
    %52 = vector.broadcast %13 : vector<4x16x1xf32> to vector<4x16x16xf32>
    %53 = arith.subf %2, %52 : vector<4x16x16xf32>
    %54 = arith.mulf %35, %53 : vector<4x16x16xf32>
    %55 = vector.shape_cast %54 : vector<4x16x16xf32> to vector<4x2x8x16xf32>
    %cst_19 = arith.constant dense<0.000000e+00> : vector<4x8x16xf32>
    %56 = vector.multi_reduction <add>, %55, %cst_19 [1] : vector<4x2x8x16xf32> to vector<4x8x16xf32>
    %cst_20 = arith.constant dense<0.000000e+00> : vector<4x8xf32>
    %57 = vector.multi_reduction <add>, %56, %cst_20 [2] : vector<4x8x16xf32> to vector<4x8xf32>
    %cst_21 = arith.constant dense<0.000000e+00> : vector<4xf32>
    %58 = vector.multi_reduction <add>, %57, %cst_21 [1] : vector<4x8xf32> to vector<4xf32>
    %59 = vector.shape_cast %58 : vector<4xf32> to vector<4x1xf32>
    %60 = tpu.concatenate %41, %46, %51, %59 in 1 : vector<4x1xf32>, vector<4x1xf32>, vector<4x1xf32>, vector<4x1xf32> -> vector<4x4xf32>
    %c0_22 = arith.constant 0 : index
    %c0_23 = arith.constant 0 : index
    %c0_24 = arith.constant 0 : index
    %c0_25 = arith.constant 0 : index
    %61 = vector.load %arg4[%c0_22, %c0_23, %c0_24, %c0_25] : memref<1x1x4x4xf32, #tpu.memory_space<vmem>>, vector<1x1x4x4xf32>
    %62 = vector.shape_cast %61 : vector<1x1x4x4xf32> to vector<4x4xf32>
    %63 = vector.shape_cast %60 : vector<4x4xf32> to vector<1x1x4x4xf32>
    tpu.vector_store %arg4[%c0_22, %c0_23, %c0_24, %c0_25], %63 {strides = array<i32>} : memref<1x1x4x4xf32, #tpu.memory_space<vmem>>, vector<1x1x4x4xf32>,
    return
  }
  func.func @transform_0(%arg0: i32, %arg1: i32) -> (i32, i32, i32, i32) {
    %c0_i32 = arith.constant 0 : i32
    %c0_i32_0 = arith.constant 0 : i32
    %c0_i32_1 = arith.constant 0 : i32
    return %arg0, %c0_i32, %arg1, %c0_i32_0 : i32, i32, i32, i32
  }
  func.func @transform_1(%arg0: i32, %arg1: i32) -> (i32, i32, i32) {
    %c0_i32 = arith.constant 0 : i32
    %c0_i32_0 = arith.constant 0 : i32
    return %arg0, %arg1, %c0_i32 : i32, i32, i32
  }
  func.func @transform_2(%arg0: i32, %arg1: i32) -> (i32, i32, i32, i32) {
    %c0_i32 = arith.constant 0 : i32
    %c0_i32_0 = arith.constant 0 : i32
    %c0_i32_1 = arith.constant 0 : i32
    return %arg0, %arg1, %c0_i32, %c0_i32_0 : i32, i32, i32, i32
  }
}

</mosaic_0001>

<llo_original>
// kernel: tpu_custom_call.1
$region0: #{tpu_custom_call.1}
  #allocation0 [shape = 'u32[]', space=smem, size = 0x4, offset = 0x4, fixed_abs, tag = 'smem constant byte address 0x4 - core index']
  #allocation1 [shape = 'u32[144,128]{1,0:T(1,128)}', space=vmem, size = 0x12000, scoped, tag = 'internal scratch']
  %s0 = inlined_call_operand.vmem [shape: bf16[2,4,32,16], index: 0, kind: input, shape index: {}]
  %s1 = inlined_call_operand.vmem [shape: s32[2,32,16], index: 1, kind: input, shape index: {}]
  %s2 = inlined_call_operand.hbm [shape: f32[2,2,4,4], index: 2, kind: output, shape index: {}]
  %s3 = sld [smem:[#allocation0]]
  $region82: #{tpu_custom_call.1} parent=0
    _
  %s5 = ssub.s32 1, %s3
  %s6 = scalar_select 0, %s5, %s3
  $region1: #{tpu_custom_call.1} parent=0
    #allocation2 [shape = 'u8[32768]{0}', space=vmem, size = 0x8000, scoped, tag = 'input window, operand 0']
    #allocation3 [shape = 'u8[4096]{0}', space=vmem, size = 0x1000, scoped, tag = 'output window, operand 0']
    #allocation4 [shape = 's32[2]{0}', space=sflag, size = 0x8, scoped, tag = 'scoped memory for tpu_custom_call.1']
    %7 = vsyncpa [#allocation4], 0
    %s8 = scalar_lea.sflag [#allocation4], 1
    %9 = vsyncpa %s8, 0
    loop: start=0, step=1, limit=6
    $region2: #{tpu_custom_call.1} parent=1 // loop_pre_header
      _
    $region3: #{tpu_custom_call.1} parent=1 // loop_header
      %s11 = sphi 0, %s15
      %p12 = scmp.ge.s32.totalorder %s11, 6
      %s18 = sphi 0, %s30
      %s19 = sphi 0, %s26
      %s20 = sphi 0, %s18
      %s21 = sphi 0, %s19
      %s22 = sphi 0, %s20
      %s23 = sphi 0, %s21
      %s35 = sphi 0, %s37
      %s38 = sphi 0, %s35
      %s39 = sphi 0, %s38
      %s55 = sphi 0, %s39
      %s63 = sphi 0, %s65
      %s66 = sphi 0, %s63
      %s67 = sphi 0, %s66
      %s83 = sphi 0, %s67
      %s91 = sphi 0, %s93
      %s94 = sphi 0, %s91
      %s95 = sphi 0, %s94
      %s111 = sphi 0, %s95
    $region4: #{tpu_custom_call.1} parent=1 // loop_header_branch
      %14 = sbr.rel (%p12) target = $region8
    $region5: #{tpu_custom_call.1} parent=1 // loop_body
      %s16 = ssub.s32 %s11, 1
      %s17 = ssub.s32 %s11, 2
      %s24 = sadd.s32 1, %s19
      %p25 = scmp.ge.s32.totalorder %s24, 2
      %s26 = scalar_select %p25, 0, %s24
      %s27 = sadd.s32 1, %s18
      %s28 = scalar_select %p25, %s27, %s18
      %p29 = scmp.ge.s32.totalorder %s28, 2
      %s30 = scalar_select %p29, 0, %s28
      %s31 = ssub.s32 %s18, %s30
      %s32 = ssub.s32 %s19, %s26
      %s33 = sor.u32 %s31, %s32
      %p34 = scmp.eq.s32.totalorder %s33, 0
      %s36 = sadd.s32 %s35, 1
      %s37 = scalar_select %p34, %s35, %s36
      %p40 = pneg %p34
      %p41 = scmp.eq.s32.totalorder %s11, 3
      %p42 = por %p40, %p41
      %p43 = scmp.ne.s32.totalorder %s35, %s38
      %p44 = scmp.eq.s32.totalorder %s11, 0
      %p45 = por %p43, %p44
      %p46 = scmp.ne.s32.totalorder %s35, %s38
      %p47 = scmp.eq.s32.totalorder %s16, 3
      %p48 = por %p46, %p47
      %p49 = scmp.ne.s32.totalorder %s38, %s39
      %p50 = scmp.eq.s32.totalorder %s16, 0
      %p51 = por %p49, %p50
      %p52 = scmp.ne.s32.totalorder %s38, %s39
      %p53 = scmp.eq.s32.totalorder %s17, 3
      %p54 = por %p52, %p53
      %p56 = scmp.ne.s32.totalorder %s39, %s55
      %p57 = scmp.eq.s32.totalorder %s17, 0
      %p58 = por %p56, %p57
      %s59 = ssub.s32 %s18, %s30
      %s60 = ssub.s32 %s19, %s26
      %s61 = sor.u32 %s59, %s60
      %p62 = scmp.eq.s32.totalorder %s61, 0
      %s64 = sadd.s32 %s63, 1
      %s65 = scalar_select %p62, %s63, %s64
      %p68 = pneg %p62
      %p69 = scmp.eq.s32.totalorder %s11, 3
      %p70 = por %p68, %p69
      %p71 = scmp.ne.s32.totalorder %s63, %s66
      %p72 = scmp.eq.s32.totalorder %s11, 0
      %p73 = por %p71, %p72
      %p74 = scmp.ne.s32.totalorder %s63, %s66
      %p75 = scmp.eq.s32.totalorder %s16, 3
      %p76 = por %p74, %p75
      %p77 = scmp.ne.s32.totalorder %s66, %s67
      %p78 = scmp.eq.s32.totalorder %s16, 0
      %p79 = por %p77, %p78
      %p80 = scmp.ne.s32.totalorder %s66, %s67
      %p81 = scmp.eq.s32.totalorder %s17, 3
      %p82 = por %p80, %p81
      %p84 = scmp.ne.s32.totalorder %s67, %s83
      %p85 = scmp.eq.s32.totalorder %s17, 0
      %p86 = por %p84, %p85
      %s87 = ssub.s32 %s18, %s30
      %s88 = ssub.s32 %s19, %s26
      %s89 = sor.u32 %s87, %s88
      %p90 = scmp.eq.s32.totalorder %s89, 0
      %s92 = sadd.s32 %s91, 1
      %s93 = scalar_select %p90, %s91, %s92
      %p96 = pneg %p90
      %p97 = scmp.eq.s32.totalorder %s11, 3
      %p98 = por %p96, %p97
      %p99 = scmp.ne.s32.totalorder %s91, %s94
      %p100 = scmp.eq.s32.totalorder %s11, 0
      %p101 = por %p99, %p100
      %p102 = scmp.ne.s32.totalorder %s91, %s94
      %p103 = scmp.eq.s32.totalorder %s16, 3
      %p104 = por %p102, %p103
      %p105 = scmp.ne.s32.totalorder %s94, %s95
      %p106 = scmp.eq.s32.totalorder %s16, 0
      %p107 = por %p105, %p106
      %p108 = scmp.ne.s32.totalorder %s94, %s95
      %p109 = scmp.eq.s32.totalorder %s17, 3
      %p110 = por %p108, %p109
      %p112 = scmp.ne.s32.totalorder %s95, %s111
      %p113 = scmp.eq.s32.totalorder %s17, 0
      %p114 = por %p112, %p113
      %p115 = scmp.le.s32.totalorder 1, %s11
      %p116 = scmp.lt.s32.totalorder %s11, 5
      %p117 = pnand %p115, %p116
      %p118 = pneg %p117
      // Predicated region
      $region9: #{tpu_custom_call.1} parent=5 // pred_check
        _
      $region10: #{tpu_custom_call.1} parent=5 // pred_check_branch
        %120 = sbr.rel (%p117) target = $region12
      $region11: #{tpu_custom_call.1} parent=5 // pred_region
        %s121 = ssub.s32 %s11, 1
      $region12: #{tpu_custom_call.1} parent=5 // pred_fallthru
        _
      %p122 = scmp.lt.s32.totalorder %s11, 4
      // Predicated region
      $region13: #{tpu_custom_call.1} parent=5 // pred_check
        %p123 = pneg %p122
      $region14: #{tpu_custom_call.1} parent=5 // pred_check_branch
        %125 = sbr.rel (%p123) target = $region16
      $region15: #{tpu_custom_call.1} parent=5 // pred_region
        // Predicated region
        $region17: #{tpu_custom_call.1} parent=15 // pred_check
          %p126 = pneg %p45
        $region18: #{tpu_custom_call.1} parent=15 // pred_check_branch
          %128 = sbr.rel (%p126) target = $region20
        $region19: #{tpu_custom_call.1} parent=15 // pred_region
          %s129 = sand.u32 %s35, 1
          %s130 = sand.u32 %s35, 1
          %s131 = smul.addr %s130, 32
          %s132 = scalar_lea.vmem [#allocation2], %s131
          %s133 = smul.u32 2, %s19
          %s134 = smul.addr %s18, 16
          %s135 = sadd.s32 %s133, %s134
          %s136 = smul.addr %s135, 4
          %s137 = scalar_lea.vmem %s0, %s136
          // Predicated region
          $region21: #{tpu_custom_call.1} parent=19 // pred_check
            _
          $region22: #{tpu_custom_call.1} parent=19 // pred_check_branch
            %139 = sbr.rel (0) target = $region24
          $region23: #{tpu_custom_call.1} parent=19 // pred_region
            // Predicated region
            $region25: #{tpu_custom_call.1} parent=23 // pred_check
              _
            $region26: #{tpu_custom_call.1} parent=23 // pred_check_branch
              %141 = sbr.rel target = $region28
            $region27: #{tpu_custom_call.1} parent=23 // pred_region
              // Predicated region
              $region40: #{tpu_custom_call.1} parent=27 // pred_check
                _
              $region41: #{tpu_custom_call.1} parent=27 // pred_check_branch
                %170 = sbr.rel (0) target = $region43
              $region42: #{tpu_custom_call.1} parent=27 // pred_region
                loop: start=0, step=1, limit=1
                $region44: #{tpu_custom_call.1} parent=42 // loop_pre_header
                  _
                $region45: #{tpu_custom_call.1} parent=42 // loop_header
                  %s172 = sphi 0, %s176
                  %p173 = scmp.ge.s32.totalorder %s172, 1
                  %s177 = sphi %s137, %s137
                  %s178 = sphi %s132, %s132
                $region46: #{tpu_custom_call.1} parent=42 // loop_header_branch
                  %175 = sbr.rel (%p173) target = $region50
                $region47: #{tpu_custom_call.1} parent=42 // loop_body
                  _
                $region48: #{tpu_custom_call.1} parent=42 // loop_footer
                  %s176 = sadd.s32 1, %s172
                $region49: #{tpu_custom_call.1} parent=42 // loop_footer_branch
                  %171 = sbr.rel target = $region45
                $region50: #{tpu_custom_call.1} parent=42 // loop_exit
                  _
                loop: start=0, step=1, limit=1
                $region51: #{tpu_custom_call.1} parent=42 // loop_pre_header
                  _
                $region52: #{tpu_custom_call.1} parent=42 // loop_header
                  %s181 = sphi 0, %s185
                  %p182 = scmp.ge.s32.totalorder %s181, 1
                  %s186 = sphi %s137, %s137
                  %s187 = sphi %s132, %s132
                $region53: #{tpu_custom_call.1} parent=42 // loop_header_branch
                  %184 = sbr.rel (%p182) target = $region57
                $region54: #{tpu_custom_call.1} parent=42 // loop_body
                  %v188 = vld [vmem:[%s186] sm:$0xf]
                  %189 = vst [vmem:[%s187] sm:$0xf] %v188
                  %v190 = vld [vmem:[%s186 + $0x4] sm:$0xf]
                  %191 = vst [vmem:[%s187 + $0x4] sm:$0xf] %v190
                  %v192 = vld [vmem:[%s186 + $0x10] sm:$0xf]
                  %193 = vst [vmem:[%s187 + $0x8] sm:$0xf] %v192
                  %v194 = vld [vmem:[%s186 + $0x14] sm:$0xf]
                  %195 = vst [vmem:[%s187 + $0xc] sm:$0xf] %v194
                  %v196 = vld [vmem:[%s186 + $0x20] sm:$0xf]
                  %197 = vst [vmem:[%s187 + $0x10] sm:$0xf] %v196
                  %v198 = vld [vmem:[%s186 + $0x24] sm:$0xf]
                  %199 = vst [vmem:[%s187 + $0x14] sm:$0xf] %v198
                  %v200 = vld [vmem:[%s186 + $0x30] sm:$0xf]
                  %201 = vst [vmem:[%s187 + $0x18] sm:$0xf] %v200
                  %v202 = vld [vmem:[%s186 + $0x34] sm:$0xf]
                  %203 = vst [vmem:[%s187 + $0x1c] sm:$0xf] %v202
                $region55: #{tpu_custom_call.1} parent=42 // loop_footer
                  %s185 = sadd.s32 1, %s181
                $region56: #{tpu_custom_call.1} parent=42 // loop_footer_branch
                  %180 = sbr.rel target = $region52
                $region57: #{tpu_custom_call.1} parent=42 // loop_exit
                  _
              $region43: #{tpu_custom_call.1} parent=27 // pred_fallthru
                _
            $region28: #{tpu_custom_call.1} parent=23 // pred_fallthru
              _
            // Predicated region
            $region29: #{tpu_custom_call.1} parent=23 // pred_check
              _
            $region30: #{tpu_custom_call.1} parent=23 // pred_check_branch
              %143 = sbr.rel (0) target = $region32
            $region31: #{tpu_custom_call.1} parent=23 // pred_region
              loop: start=0, step=1, limit=1
              $region33: #{tpu_custom_call.1} parent=31 // loop_pre_header
                _
              $region34: #{tpu_custom_call.1} parent=31 // loop_header
                %s146 = sphi 0, %s150
                %p147 = scmp.ge.s32.totalorder %s146, 1
                %s151 = sphi %s137, %s137
                %s152 = sphi %s132, %s132
              $region35: #{tpu_custom_call.1} parent=31 // loop_header_branch
                %149 = sbr.rel (%p147) target = $region39
              $region36: #{tpu_custom_call.1} parent=31 // loop_body
                %v153 = vld [vmem:[%s151] sm:$0xf]
                %154 = vst [vmem:[%s152] sm:$0xf] %v153
                %v155 = vld [vmem:[%s151 + $0x4] sm:$0xf]
                %156 = vst [vmem:[%s152 + $0x4] sm:$0xf] %v155
                %v157 = vld [vmem:[%s151 + $0x10] sm:$0xf]
                %158 = vst [vmem:[%s152 + $0x8] sm:$0xf] %v157
                %v159 = vld [vmem:[%s151 + $0x14] sm:$0xf]
                %160 = vst [vmem:[%s152 + $0xc] sm:$0xf] %v159
                %v161 = vld [vmem:[%s151 + $0x20] sm:$0xf]
                %162 = vst [vmem:[%s152 + $0x10] sm:$0xf] %v161
                %v163 = vld [vmem:[%s151 + $0x24] sm:$0xf]
                %164 = vst [vmem:[%s152 + $0x14] sm:$0xf] %v163
                %v165 = vld [vmem:[%s151 + $0x30] sm:$0xf]
                %166 = vst [vmem:[%s152 + $0x18] sm:$0xf] %v165
                %v167 = vld [vmem:[%s151 + $0x34] sm:$0xf]
                %168 = vst [vmem:[%s152 + $0x1c] sm:$0xf] %v167
              $region37: #{tpu_custom_call.1} parent=31 // loop_footer
                %s150 = sadd.s32 1, %s146
              $region38: #{tpu_custom_call.1} parent=31 // loop_footer_branch
                %145 = sbr.rel target = $region34
              $region39: #{tpu_custom_call.1} parent=31 // loop_exit
                _
            $region32: #{tpu_custom_call.1} parent=23 // pred_fallthru
              _
          $region24: #{tpu_custom_call.1} parent=19 // pred_fallthru
            _
          %204 = vnop
        $region20: #{tpu_custom_call.1} parent=15 // pred_fallthru
          _
        // Predicated region
        $region58: #{tpu_custom_call.1} parent=15 // pred_check
          %p205 = pneg %p73
        $region59: #{tpu_custom_call.1} parent=15 // pred_check_branch
          %207 = sbr.rel (%p205) target = $region61
        $region60: #{tpu_custom_call.1} parent=15 // pred_region
          %s208 = smul.u32 2, %s19
          %p209 = scmp.lt.s32.totalorder %s18, 1
          %s210 = scalar_select %p209, %s18, 1
          %p211 = scmp.lt.s32.totalorder %s208, 3
          %s212 = scalar_select %p211, %s208, 3
          %s213 = smul.addr %s210, 4
          %s214 = sadd.s32 %s212, %s213
          %s215 = smul.addr %s214, 8
          %s216 = scalar_lea.vmem %s1, %s215
          %s217 = smul.u32 2, %s19
        $region61: #{tpu_custom_call.1} parent=15 // pred_fallthru
          _
      $region16: #{tpu_custom_call.1} parent=5 // pred_fallthru
        _
      %p218 = scmp.le.s32.totalorder 1, %s11
      %p219 = scmp.lt.s32.totalorder %s11, 5
      %p220 = pnand %p218, %p219
      %p221 = pneg %p220
      // Predicated region
      $region62: #{tpu_custom_call.1} parent=5 // pred_check
        _
      $region63: #{tpu_custom_call.1} parent=5 // pred_check_branch
        %223 = sbr.rel (%p220) target = $region65
      $region64: #{tpu_custom_call.1} parent=5 // pred_region
        %s224 = ssub.s32 %s11, 1
        %s225 = sand.u32 %s38, 1
        %s226 = sand.u32 %s38, 1
        %s227 = smul.addr %s226, 32
        %s228 = scalar_lea.vmem [#allocation2], %s227
        // Predicated region
        $region66: #{tpu_custom_call.1} parent=64 // pred_check
          %p229 = pneg %p51
        $region67: #{tpu_custom_call.1} parent=64 // pred_check_branch
          %231 = sbr.rel (%p229) target = $region69
        $region68: #{tpu_custom_call.1} parent=64 // pred_region
          _
        $region69: #{tpu_custom_call.1} parent=64 // pred_fallthru
          _
        %s232 = sand.u32 %s38, 1
        %s233 = sand.u32 %s38, 1
        %s234 = smul.addr %s233, 32
        %s235 = scalar_lea.vmem [#allocation2], %s234
        %p236 = pneg %p51
        %p237 = pneg %p48
        %s238 = smul.u32 2, %s21
        %p239 = scmp.lt.s32.totalorder %s20, 1
        %s240 = scalar_select %p239, %s20, 1
        %p241 = scmp.lt.s32.totalorder %s238, 3
        %s242 = scalar_select %p241, %s238, 3
        %s243 = smul.addr %s240, 4
        %s244 = sadd.s32 %s242, %s243
        %s245 = smul.addr %s244, 8
        %s246 = scalar_lea.vmem %s1, %s245
        %p247 = pneg %p79
        %p248 = pneg %p76
        %p249 = pneg %p107
        %p250 = pneg %p104
        %s251 = sand.u32 %s94, 1
        %s252 = scalar_lea.sflag [#allocation4], %s251
        %s253 = sand.u32 %s94, 1
        %s254 = smul.addr %s253, 4
        %s255 = scalar_lea.vmem [#allocation3], %s254
        %s256 = smul.u32 2, %s21
        %s257 = smul.u32 2, %s21
        %p258 = scmp.lt.s32.totalorder %s20, 1
        %s259 = scalar_select %p258, %s20, 1
        %p260 = scmp.lt.s32.totalorder %s257, 3
        %s261 = scalar_select %p260, %s257, 3
        %s262 = smul.addr %s259, 4
        %s263 = sadd.s32 %s261, %s262
        %s264 = smul.addr %s263, 8
        %s265 = scalar_lea.vmem %s1, %s264
        %s266 = smul.u32 2, %s21
        %v267 = vld [vmem:[%s228] sm:$0xf]
        %v268 = vld [vmem:[%s228 + $0x4] sm:$0xf]
        %v269 = vld [vmem:[%s228 + $0x8] sm:$0xf]
        %v270 = vld [vmem:[%s228 + $0xc] sm:$0xf]
        %v271 = vld [vmem:[%s228 + $0x10] sm:$0xf]
        %v272 = vld [vmem:[%s228 + $0x14] sm:$0xf]
        %v273 = vld [vmem:[%s228 + $0x18] sm:$0xf]
        %v274 = vld [vmem:[%s228 + $0x1c] sm:$0xf]
        %v275 = vunpack.c.l.bf16 %v267
        %v276 = vunpack.c.l.bf16 %v268
        %v277 = vunpack.c.l.bf16 %v269
        %v278 = vunpack.c.l.bf16 %v270
        %v279 = vunpack.c.l.bf16 %v271
        %v280 = vunpack.c.l.bf16 %v272
        %v281 = vunpack.c.l.bf16 %v273
        %v282 = vunpack.c.l.bf16 %v274
        %v283 = vld [vmem:[%s265] sm:$0xff]
        %v284 = vld [vmem:[%s265 + $0x8] sm:$0xff]
        %vm285 = vcmask 130048
        %v286 = vsel %vm285, %v275, -inf
        %287 = vmax.xlane.f32.xlu0 %v286
        %v288 = vpop.xlane.xlu0 %287
        %v289 = vsel %vm285, %v276, -inf
        %290 = vmax.xlane.f32.xlu0 %v289
        %v291 = vpop.xlane.xlu0 %290
        %v292 = vsel %vm285, %v277, -inf
        %293 = vmax.xlane.f32.xlu0 %v292
        %v294 = vpop.xlane.xlu0 %293
        %v295 = vsel %vm285, %v278, -inf
        %296 = vmax.xlane.f32.xlu0 %v295
        %v297 = vpop.xlane.xlu0 %296
        %v298 = vsel %vm285, %v279, -inf
        %299 = vmax.xlane.f32.xlu0 %v298
        %v300 = vpop.xlane.xlu0 %299
        %v301 = vsel %vm285, %v280, -inf
        %302 = vmax.xlane.f32.xlu0 %v301
        %v303 = vpop.xlane.xlu0 %302
        %v304 = vsel %vm285, %v281, -inf
        %305 = vmax.xlane.f32.xlu0 %v304
        %v306 = vpop.xlane.xlu0 %305
        %v307 = vsel %vm285, %v282, -inf
        %308 = vmax.xlane.f32.xlu0 %v307
        %v309 = vpop.xlane.xlu0 %308
        %v310 = vsub.f32 %v275, %v288
        %v311 = vsub.f32 %v276, %v291
        %v312 = vsub.f32 %v277, %v294
        %v313 = vsub.f32 %v278, %v297
        %v314 = vsub.f32 %v279, %v300
        %v315 = vsub.f32 %v280, %v303
        %v316 = vsub.f32 %v281, %v306
        %v317 = vsub.f32 %v282, %v309
        %v318 = vmul.f32 %v310, 1.442695
        %v319 = vpow.pop %v318
        %v320 = vmul.f32 %v311, 1.442695
        %v321 = vpow.pop %v320
        %v322 = vmul.f32 %v312, 1.442695
        %v323 = vpow.pop %v322
        %v324 = vmul.f32 %v313, 1.442695
        %v325 = vpow.pop %v324
        %v326 = vmul.f32 %v314, 1.442695
        %v327 = vpow.pop %v326
        %v328 = vmul.f32 %v315, 1.442695
        %v329 = vpow.pop %v328
        %v330 = vmul.f32 %v316, 1.442695
        %v331 = vpow.pop %v330
        %v332 = vmul.f32 %v317, 1.442695
        %v333 = vpow.pop %v332
        %v334 = vsel %vm285, %v319, 0.0
        %335 = vadd.xlane.f32.xlu0 %v334
        %v336 = vpop.xlane.xlu0 %335
        %v337 = vsel %vm285, %v321, 0.0
        %338 = vadd.xlane.f32.xlu0 %v337
        %v339 = vpop.xlane.xlu0 %338
        %v340 = vsel %vm285, %v323, 0.0
        %341 = vadd.xlane.f32.xlu0 %v340
        %v342 = vpop.xlane.xlu0 %341
        %v343 = vsel %vm285, %v325, 0.0
        %344 = vadd.xlane.f32.xlu0 %v343
        %v345 = vpop.xlane.xlu0 %344
        %v346 = vsel %vm285, %v327, 0.0
        %347 = vadd.xlane.f32.xlu0 %v346
        %v348 = vpop.xlane.xlu0 %347
        %v349 = vsel %vm285, %v329, 0.0
        %350 = vadd.xlane.f32.xlu0 %v349
        %v351 = vpop.xlane.xlu0 %350
        %v352 = vsel %vm285, %v331, 0.0
        %353 = vadd.xlane.f32.xlu0 %v352
        %v354 = vpop.xlane.xlu0 %353
        %v355 = vsel %vm285, %v333, 0.0
        %356 = vadd.xlane.f32.xlu0 %v355
        %v357 = vpop.xlane.xlu0 %356
        %v358 = vlog2.pop %v336
        %v359 = vmul.f32 %v358, 0.6931472
        %v360 = vlog2.pop %v339
        %v361 = vmul.f32 %v360, 0.6931472
        %v362 = vlog2.pop %v342
        %v363 = vmul.f32 %v362, 0.6931472
        %v364 = vlog2.pop %v345
        %v365 = vmul.f32 %v364, 0.6931472
        %v366 = vlog2.pop %v348
        %v367 = vmul.f32 %v366, 0.6931472
        %v368 = vlog2.pop %v351
        %v369 = vmul.f32 %v368, 0.6931472
        %v370 = vlog2.pop %v354
        %v371 = vmul.f32 %v370, 0.6931472
        %v372 = vlog2.pop %v357
        %v373 = vmul.f32 %v372, 0.6931472
        %v374 = vadd.f32 %v288, %v359
        %v375 = vadd.f32 %v291, %v361
        %v376 = vadd.f32 %v294, %v363
        %v377 = vadd.f32 %v297, %v365
        %v378 = vadd.f32 %v300, %v367
        %v379 = vadd.f32 %v303, %v369
        %v380 = vadd.f32 %v306, %v371
        %v381 = vadd.f32 %v309, %v373
        %v382 = vmax.f32 %v288, %v300
        %v383 = vmax.f32 %v294, %v306
        %v384 = vmax.f32 %v382, %v383
        %v385 = vmax.f32 %v291, %v303
        %v386 = vmax.f32 %v297, %v309
        %v387 = vmax.f32 %v385, %v386
        %v388 = vsub.f32 %v288, %v384
        %v389 = vsub.f32 %v291, %v387
        %v390 = vsub.f32 %v294, %v384
        %v391 = vsub.f32 %v297, %v387
        %v392 = vsub.f32 %v300, %v384
        %v393 = vsub.f32 %v303, %v387
        %v394 = vsub.f32 %v306, %v384
        %v395 = vsub.f32 %v309, %v387
        %v396 = vmul.f32 %v388, 1.442695
        %v397 = vpow.pop %v396
        %v398 = vmul.f32 %v389, 1.442695
        %v399 = vpow.pop %v398
        %v400 = vmul.f32 %v390, 1.442695
        %v401 = vpow.pop %v400
        %v402 = vmul.f32 %v391, 1.442695
        %v403 = vpow.pop %v402
        %v404 = vmul.f32 %v392, 1.442695
        %v405 = vpow.pop %v404
        %v406 = vmul.f32 %v393, 1.442695
        %v407 = vpow.pop %v406
        %v408 = vmul.f32 %v394, 1.442695
        %v409 = vpow.pop %v408
        %v410 = vmul.f32 %v395, 1.442695
        %v411 = vpow.pop %v410
        %v412 = vmul.f32 %v319, %v397
        %v413 = vmul.f32 %v321, %v399
        %v414 = vmul.f32 %v323, %v401
        %v415 = vmul.f32 %v325, %v403
        %v416 = vmul.f32 %v327, %v405
        %v417 = vmul.f32 %v329, %v407
        %v418 = vmul.f32 %v331, %v409
        %v419 = vmul.f32 %v333, %v411
        %v420 = vsel %vm285, %v412, 0.0
        %v421 = vsel %vm285, %v414, 0.0
        %v422 = vadd.f32 %v420, %v421
        %v423 = vsel %vm285, %v416, 0.0
        %v424 = vadd.f32 %v422, %v423
        %v425 = vsel %vm285, %v418, 0.0
        %v426 = vadd.f32 %v424, %v425
        %v427 = vsel %vm285, %v413, 0.0
        %v428 = vsel %vm285, %v415, 0.0
        %v429 = vadd.f32 %v427, %v428
        %v430 = vsel %vm285, %v417, 0.0
        %v431 = vadd.f32 %v429, %v430
        %v432 = vsel %vm285, %v419, 0.0
        %v433 = vadd.f32 %v431, %v432
        %v434 = vmax.f32 %v426, 1e-30
        %v435 = vmax.f32 %v433, 1e-30
        %v436 = vrcp.pop %v434
        %v437 = vrcp.pop %v435
        %v438 = vmul.f32 %v412, %v436
        %v439 = vmul.f32 %v413, %v437
        %v440 = vmul.f32 %v414, %v436
        %v441 = vmul.f32 %v415, %v437
        %v442 = vmul.f32 %v416, %v436
        %v443 = vmul.f32 %v417, %v437
        %v444 = vmul.f32 %v418, %v436
        %v445 = vmul.f32 %v419, %v437
        %v446 = vlaneseq
        %v447 = vshrl.u32 %v446, 7
        %v448 = vlaneseq
        %v449 = vshrl.u32 %v448, 7
        %v450 = vsub.s32 0, %v449
        %v451 = vrot.slane %v447, %v450
        %v452 = vlaneseq
        %v453 = vshrl.u32 %v452, 7
        %v454 = vsub.s32 1, %v453
        %v455 = vrot.slane %v447, %v454
        %v456 = vlaneseq
        %v457 = vshrl.u32 %v456, 7
        %v458 = vsub.s32 2, %v457
        %v459 = vrot.slane %v447, %v458
        %v460 = vlaneseq
        %v461 = vshrl.u32 %v460, 7
        %v462 = vsub.s32 3, %v461
        %v463 = vrot.slane %v447, %v462
        %vm464 = vcmp.eq.s32.totalorder %v283, %v451
        %vm465 = vcmp.eq.s32.totalorder %v284, %v451
        %vm466 = vcmp.eq.s32.totalorder %v283, %v455
        %vm467 = vcmp.eq.s32.totalorder %v284, %v455
        %vm468 = vcmp.eq.s32.totalorder %v283, %v459
        %vm469 = vcmp.eq.s32.totalorder %v284, %v459
        %vm470 = vcmp.eq.s32.totalorder %v283, %v463
        %vm471 = vcmp.eq.s32.totalorder %v284, %v463
        %v472 = vsel %vm464, 1, 0
        %v473 = vsel %vm465, 1, 0
        %v474 = vsel %vm466, 1, 0
        %v475 = vsel %vm467, 1, 0
        %v476 = vsel %vm468, 1, 0
        %v477 = vsel %vm469, 1, 0
        %v478 = vsel %vm470, 1, 0
        %v479 = vsel %vm471, 1, 0
        %v480 = vcvt.s32.f32 %v472
        %v481 = vcvt.s32.f32 %v473
        %v482 = vcvt.s32.f32 %v474
        %v483 = vcvt.s32.f32 %v475
        %v484 = vcvt.s32.f32 %v476
        %v485 = vcvt.s32.f32 %v477
        %v486 = vcvt.s32.f32 %v478
        %v487 = vcvt.s32.f32 %v479
        %v488 = vmul.f32 %v438, %v480
        %v489 = vmul.f32 %v439, %v481
        %v490 = vmul.f32 %v440, %v482
        %v491 = vmul.f32 %v441, %v483
        %v492 = vmul.f32 %v442, %v484
        %v493 = vmul.f32 %v443, %v485
        %v494 = vmul.f32 %v444, %v486
        %v495 = vmul.f32 %v445, %v487
        %v496 = vsel %vm285, %v488, 0.0
        %v497 = vsel %vm285, %v489, 0.0
        %v498 = vadd.f32 %v496, %v497
        %v499 = vsel %vm285, %v490, 0.0
        %v500 = vsel %vm285, %v491, 0.0
        %v501 = vadd.f32 %v499, %v500
        %v502 = vsel %vm285, %v492, 0.0
        %v503 = vsel %vm285, %v493, 0.0
        %v504 = vadd.f32 %v502, %v503
        %v505 = vsel %vm285, %v494, 0.0
        %v506 = vsel %vm285, %v495, 0.0
        %v507 = vadd.f32 %v505, %v506
        %v508 = vsel %vm285, %v498, 0.0
        %509 = vadd.xlane.f32.xlu0 %v508
        %v510 = vpop.xlane.xlu0 %509
        %v511 = vsel %vm285, %v501, 0.0
        %512 = vadd.xlane.f32.xlu0 %v511
        %v513 = vpop.xlane.xlu0 %512
        %v514 = vsel %vm285, %v504, 0.0
        %515 = vadd.xlane.f32.xlu0 %v514
        %v516 = vpop.xlane.xlu0 %515
        %v517 = vsel %vm285, %v507, 0.0
        %518 = vadd.xlane.f32.xlu0 %v517
        %v519 = vpop.xlane.xlu0 %518
        %v524 = vlaneseq
        %v525 = vand.u32 %v524, 127
        %v526 = vlaneseq
        %v527 = vshrl.u32 %v526, 7
        %v528 = vsub.s32 %v525, %v527
        %v529 = vrot.slane %v510, %v528
        %v530 = vlaneseq
        %v531 = vshrl.u32 %v530, 7
        %v532 = vsub.s32 %v525, %v531
        %v533 = vrot.slane %v513, %v532
        %v534 = vlaneseq
        %v535 = vshrl.u32 %v534, 7
        %v536 = vsub.s32 %v525, %v535
        %v537 = vrot.slane %v516, %v536
        %v538 = vlaneseq
        %v539 = vshrl.u32 %v538, 7
        %v540 = vsub.s32 %v525, %v539
        %v541 = vrot.slane %v519, %v540
        %vm542 = vcmask 1041409
        %v543 = vsel %vm542, %v533, %v529
        %vm544 = vcmask 1042434
        %v545 = vsel %vm544, %v537, %v543
        %vm546 = vcmask 1043459
        %v547 = vsel %vm546, %v541, %v545
        %vm549 = vcmask 60416
        %v550 = vsel %vm549, %v547, 0.0
        %551 = vadd.xlane.f32.xlu0 %v550
        %v552 = vpop.xlane.xlu0 %551
        %v553 = vsel %vm285, %v438, 0.0
        %v554 = vsel %vm285, %v439, 0.0
        %v555 = vadd.f32 %v553, %v554
        %v556 = vsel %vm285, %v440, 0.0
        %v557 = vsel %vm285, %v441, 0.0
        %v558 = vadd.f32 %v556, %v557
        %v559 = vsel %vm285, %v442, 0.0
        %v560 = vsel %vm285, %v443, 0.0
        %v561 = vadd.f32 %v559, %v560
        %v562 = vsel %vm285, %v444, 0.0
        %v563 = vsel %vm285, %v445, 0.0
        %v564 = vadd.f32 %v562, %v563
        %v565 = vsel %vm285, %v555, 0.0
        %566 = vadd.xlane.f32.xlu0 %v565
        %v567 = vpop.xlane.xlu0 %566
        %v568 = vsel %vm285, %v558, 0.0
        %569 = vadd.xlane.f32.xlu0 %v568
        %v570 = vpop.xlane.xlu0 %569
        %v571 = vsel %vm285, %v561, 0.0
        %572 = vadd.xlane.f32.xlu0 %v571
        %v573 = vpop.xlane.xlu0 %572
        %v574 = vsel %vm285, %v564, 0.0
        %575 = vadd.xlane.f32.xlu0 %v574
        %v576 = vpop.xlane.xlu0 %575
        %v581 = vlaneseq
        %v582 = vshrl.u32 %v581, 7
        %v583 = vsub.s32 %v525, %v582
        %v584 = vrot.slane %v567, %v583
        %v585 = vlaneseq
        %v586 = vshrl.u32 %v585, 7
        %v587 = vsub.s32 %v525, %v586
        %v588 = vrot.slane %v570, %v587
        %v589 = vlaneseq
        %v590 = vshrl.u32 %v589, 7
        %v591 = vsub.s32 %v525, %v590
        %v592 = vrot.slane %v573, %v591
        %v593 = vlaneseq
        %v594 = vshrl.u32 %v593, 7
        %v595 = vsub.s32 %v525, %v594
        %v596 = vrot.slane %v576, %v595
        %v597 = vsel %vm542, %v588, %v584
        %v598 = vsel %vm544, %v592, %v597
        %v599 = vsel %vm546, %v596, %v598
        %v601 = vsel %vm549, %v599, 0.0
        %602 = vadd.xlane.f32.xlu0 %v601
        %v603 = vpop.xlane.xlu0 %602
        %v604 = vsel %vm285, %v480, 0.0
        %v605 = vsel %vm285, %v481, 0.0
        %v606 = vadd.f32 %v604, %v605
        %v607 = vsel %vm285, %v482, 0.0
        %v608 = vsel %vm285, %v483, 0.0
        %v609 = vadd.f32 %v607, %v608
        %v610 = vsel %vm285, %v484, 0.0
        %v611 = vsel %vm285, %v485, 0.0
        %v612 = vadd.f32 %v610, %v611
        %v613 = vsel %vm285, %v486, 0.0
        %v614 = vsel %vm285, %v487, 0.0
        %v615 = vadd.f32 %v613, %v614
        %v616 = vsel %vm285, %v606, 0.0
        %617 = vadd.xlane.f32.xlu0 %v616
        %v618 = vpop.xlane.xlu0 %617
        %v619 = vsel %vm285, %v609, 0.0
        %620 = vadd.xlane.f32.xlu0 %v619
        %v621 = vpop.xlane.xlu0 %620
        %v622 = vsel %vm285, %v612, 0.0
        %623 = vadd.xlane.f32.xlu0 %v622
        %v624 = vpop.xlane.xlu0 %623
        %v625 = vsel %vm285, %v615, 0.0
        %626 = vadd.xlane.f32.xlu0 %v625
        %v627 = vpop.xlane.xlu0 %626
        %v632 = vlaneseq
        %v633 = vshrl.u32 %v632, 7
        %v634 = vsub.s32 %v525, %v633
        %v635 = vrot.slane %v618, %v634
        %v636 = vlaneseq
        %v637 = vshrl.u32 %v636, 7
        %v638 = vsub.s32 %v525, %v637
        %v639 = vrot.slane %v621, %v638
        %v640 = vlaneseq
        %v641 = vshrl.u32 %v640, 7
        %v642 = vsub.s32 %v525, %v641
        %v643 = vrot.slane %v624, %v642
        %v644 = vlaneseq
        %v645 = vshrl.u32 %v644, 7
        %v646 = vsub.s32 %v525, %v645
        %v647 = vrot.slane %v627, %v646
        %v648 = vsel %vm542, %v639, %v635
        %v649 = vsel %vm544, %v643, %v648
        %v650 = vsel %vm546, %v647, %v649
        %v652 = vsel %vm549, %v650, 0.0
        %653 = vadd.xlane.f32.xlu0 %v652
        %v654 = vpop.xlane.xlu0 %653
        %v655 = vsub.f32 %v275, %v374
        %v656 = vsub.f32 %v276, %v375
        %v657 = vsub.f32 %v277, %v376
        %v658 = vsub.f32 %v278, %v377
        %v659 = vsub.f32 %v279, %v378
        %v660 = vsub.f32 %v280, %v379
        %v661 = vsub.f32 %v281, %v380
        %v662 = vsub.f32 %v282, %v381
        %v663 = vmul.f32 %v480, %v655
        %v664 = vmul.f32 %v481, %v656
        %v665 = vmul.f32 %v482, %v657
        %v666 = vmul.f32 %v483, %v658
        %v667 = vmul.f32 %v484, %v659
        %v668 = vmul.f32 %v485, %v660
        %v669 = vmul.f32 %v486, %v661
        %v670 = vmul.f32 %v487, %v662
        %v671 = vsel %vm285, %v663, 0.0
        %v672 = vsel %vm285, %v664, 0.0
        %v673 = vadd.f32 %v671, %v672
        %v674 = vsel %vm285, %v665, 0.0
        %v675 = vsel %vm285, %v666, 0.0
        %v676 = vadd.f32 %v674, %v675
        %v677 = vsel %vm285, %v667, 0.0
        %v678 = vsel %vm285, %v668, 0.0
        %v679 = vadd.f32 %v677, %v678
        %v680 = vsel %vm285, %v669, 0.0
        %v681 = vsel %vm285, %v670, 0.0
        %v682 = vadd.f32 %v680, %v681
        %v683 = vsel %vm285, %v673, 0.0
        %684 = vadd.xlane.f32.xlu0 %v683
        %v685 = vpop.xlane.xlu0 %684
        %v686 = vsel %vm285, %v676, 0.0
        %687 = vadd.xlane.f32.xlu0 %v686
        %v688 = vpop.xlane.xlu0 %687
        %v689 = vsel %vm285, %v679, 0.0
        %690 = vadd.xlane.f32.xlu0 %v689
        %v691 = vpop.xlane.xlu0 %690
        %v692 = vsel %vm285, %v682, 0.0
        %693 = vadd.xlane.f32.xlu0 %v692
        %v694 = vpop.xlane.xlu0 %693
        %v699 = vlaneseq
        %v700 = vshrl.u32 %v699, 7
        %v701 = vsub.s32 %v525, %v700
        %v702 = vrot.slane %v685, %v701
        %v703 = vlaneseq
        %v704 = vshrl.u32 %v703, 7
        %v705 = vsub.s32 %v525, %v704
        %v706 = vrot.slane %v688, %v705
        %v707 = vlaneseq
        %v708 = vshrl.u32 %v707, 7
        %v709 = vsub.s32 %v525, %v708
        %v710 = vrot.slane %v691, %v709
        %v711 = vlaneseq
        %v712 = vshrl.u32 %v711, 7
        %v713 = vsub.s32 %v525, %v712
        %v714 = vrot.slane %v694, %v713
        %v715 = vsel %vm542, %v706, %v702
        %v716 = vsel %vm544, %v710, %v715
        %v717 = vsel %vm546, %v714, %v716
        %v719 = vsel %vm549, %v717, 0.0
        %720 = vadd.xlane.f32.xlu0 %v719
        %v721 = vpop.xlane.xlu0 %720
        %vm722 = vcmask 7168
        %v723 = vsel %vm722, %v552, %v603
        %vm724 = vcmask 15360
        %v725 = vsel %vm724, %v723, %v654
        %vm726 = vcmask 23552
        %v727 = vsel %vm726, %v725, %v721
        %vm728 = vcmask 27648
        %729 = vst.msk [vmem:[%s255] sm:$0xf] %vm728, %v727
        %s730 = sand.u32 %s94, 1
        %s731 = scalar_lea.sflag [#allocation4], %s730
        %s732 = sand.u32 %s94, 1
        %s733 = smul.addr %s732, 4
        %s734 = scalar_lea.vmem [#allocation3], %s733
        // Predicated region
        $region70: #{tpu_custom_call.1} parent=64 // pred_check
          %p735 = pneg %p104
        $region71: #{tpu_custom_call.1} parent=64 // pred_check_branch
          %737 = sbr.rel (%p735) target = $region73
        $region72: #{tpu_custom_call.1} parent=64 // pred_region
          %s739 = ssub.s32 64, 64
          %740 = vsyncadd %s731, %s739
          %s741 = smul.addr %s20, 2
          %s742 = sadd.s32 %s21, %s741
          %s743 = smul.addr %s742, 64
          %s744 = scalar_lea.hbm %s2, %s743
          %s746 = sshll.u32 %s734, 4
          %s747 = int_to_ptr.vmem [resolvable:$true] %s746
          %749 = dma.vmem_to_hbm [thread:$0]  %s747, 64, %s744, %s731
        $region73: #{tpu_custom_call.1} parent=64 // pred_fallthru
          _
      $region65: #{tpu_custom_call.1} parent=5 // pred_fallthru
        _
      %p750 = scmp.le.s32.totalorder 2, %s11
      // Predicated region
      $region74: #{tpu_custom_call.1} parent=5 // pred_check
        %p751 = pneg %p750
      $region75: #{tpu_custom_call.1} parent=5 // pred_check_branch
        %753 = sbr.rel (%p751) target = $region77
      $region76: #{tpu_custom_call.1} parent=5 // pred_region
        %s754 = ssub.s32 %s11, 2
        // Predicated region
        $region78: #{tpu_custom_call.1} parent=76 // pred_check
          %p755 = pneg %p110
        $region79: #{tpu_custom_call.1} parent=76 // pred_check_branch
          %757 = sbr.rel (%p755) target = $region81
        $region80: #{tpu_custom_call.1} parent=76 // pred_region
          %s758 = sand.u32 %s95, 1
          %s759 = scalar_lea.sflag [#allocation4], %s758
          %s760 = sand.u32 %s95, 1
          %s761 = smul.addr %s760, 4
          %s762 = scalar_lea.vmem [#allocation3], %s761
          %763 = dma.done %s759, 64
        $region81: #{tpu_custom_call.1} parent=76 // pred_fallthru
          _
      $region77: #{tpu_custom_call.1} parent=5 // pred_fallthru
        _
    $region6: #{tpu_custom_call.1} parent=1 // loop_footer
      %s15 = sadd.s32 1, %s11
    $region7: #{tpu_custom_call.1} parent=1 // loop_footer_branch
      %10 = sbr.rel target = $region3
    $region8: #{tpu_custom_call.1} parent=1 // loop_exit
      _
    %764 = vsyncpa [#allocation4], 1
    %s765 = scalar_lea.sflag [#allocation4], 1
    %766 = vsyncpa %s765, 1

</llo_original>
